<compile_context>
chip_gen: v7x
topology: tpu7x:2x2x1
jax: 0.10.0
libtpu: 0.0.40
codegen_flags: <defaults>
</compile_context>

<pallas_src>
import functools

import jax
import jax.numpy as jnp
from jax.experimental import pallas as pl
from jax.experimental.pallas import tpu as pltpu


def _round_up(x, m):
    return ((x + m - 1) // m) * m


def _time2vec_kernel(num_pass, trend_w_ref, trend_b_ref, in_ref, wpad_ref, pb_ref, out_ref):
    """One M-tile of rows.

    in_ref   : (mt, D)      full input rows (x || t), flattened over (batch, seq)
    wpad_ref : (D, F)       periodic weight zero-padded over the first num_pass rows
    pb_ref   : (mt, F)      periodic bias pre-tiled over the batch-tile
    out_ref  : (mt, D + F)  x || trend || periodic
    """
    inp = in_ref[...]                                   # (mt, D), input dtype
    mt, d = inp.shape

    tw = trend_w_ref[0]
    tb = trend_b_ref[0]

    # Head = pass-through x columns, affine trend on the t columns.  Pure VPU work in
    # f32 (v5e has no bf16 VPU path); no lane-offset slicing, just a lane-iota select.
    inp_f32 = inp.astype(jnp.float32)
    lane = jax.lax.broadcasted_iota(jnp.int32, (mt, d), 1)
    head = jnp.where(lane >= num_pass, tw * inp_f32 + tb, inp_f32)       # (mt, D) f32

    # Periodic: weight is zero-padded over the x columns, so the full input block is
    # fed straight to the MXU (operands stay in input dtype, f32 accumulation).
    proj = jnp.dot(inp, wpad_ref[...], preferred_element_type=jnp.float32)  # (mt, F)
    periodic = jnp.sin(proj + pb_ref[...].astype(jnp.float32))              # (mt, F)

    # Single full-view, lane-dense store of the whole output slab.
    out_ref[...] = jnp.concatenate([head, periodic], axis=-1).astype(out_ref.dtype)


def _choose_batch_tile(B, S, D, F, dtype, vmem_budget_bytes=24 << 20):
    """Largest batch tile (divisor of B) whose *padded* VMEM footprint fits the
    budget.  Accounts for (8,128)/(16,128) tile padding, double-buffered streamed
    blocks and the resident weight/bias blocks.  Splits into >= 2 grid steps only
    when each step still moves >= ~1 MiB (so the v7x second TensorCore is only used
    when per-step work dwarfs the ~0.35 us step overhead)."""
    itemsize = jnp.dtype(dtype).itemsize
    sub = {4: 8, 2: 16, 1: 32}.get(itemsize, 8)
    out_d = D + F

    def padded(rows, cols):
        return _round_up(max(rows, 1), sub) * _round_up(max(cols, 1), 128) * itemsize

    def footprint(bt):
        mt = bt * S
        streamed = 2 * (padded(mt, D) + padded(mt, out_d))   # double-buffered in/out
        resident = 2 * (padded(D, F) + padded(mt, F))        # weight + tiled bias
        return streamed + resident

    def step_slab(bt):
        mt = bt * S
        return padded(mt, D) + padded(mt, out_d)

    # Divisors of B whose M-tile satisfies the sublane constraint (or is the full M).
    divisors = [d for d in range(1, B + 1)
                if B % d == 0 and ((d * S) % sub == 0 or d == B)]
    fitting = [d for d in divisors if footprint(d) <= vmem_budget_bytes]
    if not fitting:
        return min(divisors)
    bt = max(fitting)
    if bt == B and B > 1:
        halves = [d for d in fitting if d <= B // 2]
        if halves and step_slab(max(halves)) >= (1 << 20):
            bt = max(halves)
    return bt


def time2vec_pallas(inputs, trend_weight, trend_bias, periodic_weight, periodic_bias,
                    *, num_vars, num_frequency):
    B, S, D = inputs.shape
    t_dim = D - num_vars + 1
    num_pass = num_vars - 1
    F = num_frequency
    assert periodic_weight.shape == (t_dim, F)
    assert periodic_bias.shape == (S, F)

    out_d = D + F
    bt = _choose_batch_tile(B, S, D, F, inputs.dtype)
    mt = bt * S
    grid = (B // bt,)

    # One-time wrapper-side layout plumbing (no per-step cost, no extra HBM round-trip):
    #  * flatten (B, S) -> M rows so the kernel tiles one fat M axis
    #  * zero-pad the periodic weight over the pass-through columns so the kernel
    #    can feed the whole input block to the MXU without a lane-offset slice
    #  * pre-tile the (S, F) periodic bias to the (mt, F) block (resident in VMEM)
    inp2d = inputs.reshape(B * S, D)
    w_padded = jnp.zeros((D, F), dtype=periodic_weight.dtype).at[num_pass:, :].set(periodic_weight)
    pb_tiled = jnp.tile(periodic_bias, (bt, 1))                      # (mt, F)
    tw = trend_weight.reshape(1).astype(jnp.float32)
    tb = trend_bias.reshape(1).astype(jnp.float32)

    kernel = functools.partial(_time2vec_kernel, num_pass)

    out2d = pl.pallas_call(
        kernel,
        out_shape=jax.ShapeDtypeStruct((B * S, out_d), inputs.dtype),
        grid_spec=pltpu.PrefetchScalarGridSpec(
            num_scalar_prefetch=0,
            grid=grid,
            in_specs=[
                pl.BlockSpec(memory_space=pltpu.MemorySpace.SMEM),   # trend_weight (1,)
                pl.BlockSpec(memory_space=pltpu.MemorySpace.SMEM),   # trend_bias   (1,)
                pl.BlockSpec((mt, D), lambda i: (i, 0)),             # streamed input rows
                pl.BlockSpec((D, F), lambda i: (0, 0)),              # resident padded weight
                pl.BlockSpec((mt, F), lambda i: (0, 0)),             # resident tiled bias
            ],
            out_specs=pl.BlockSpec((mt, out_d), lambda i: (i, 0)),
        ),
        compiler_params=pltpu.CompilerParams(
            dimension_semantics=("parallel",),
            vmem_limit_bytes=48 * 1024 * 1024,   # fits v7x's 64 MiB per-TC VMEM with headroom
        ),
    )(tw, tb, inp2d, w_padded, pb_tiled)

    return out2d.reshape(B, S, out_d)


def time2vec_reference(inputs, trend_weight, trend_bias, periodic_weight, periodic_bias,
                       *, num_vars):
    x = inputs[:, :, :num_vars - 1]
    t = inputs[:, :, num_vars - 1:]
    trend = trend_weight[0] * t + trend_bias[0]
    periodic = jnp.sin(jnp.matmul(t, periodic_weight) + periodic_bias)
    return jnp.concatenate([x, trend, periodic], axis=-1)


if __name__ == "__main__":
    # Small shapes consistent with the module's forward.
    B, S, D = 2, 8, 16
    num_vars = 4          # -> x has 3 features, t has D - num_vars + 1 = 13
    num_frequency = 32
    t_dim = D - num_vars + 1

    key = jax.random.PRNGKey(0)
    k_in, k_tw, k_tb, k_pw, k_pb = jax.random.split(key, 5)

    inputs = jax.random.normal(k_in, (B, S, D), dtype=jnp.float32)
    # nn.init.uniform_ default is U[0, 1)
    trend_weight = jax.random.uniform(k_tw, (1,), dtype=jnp.float32)
    trend_bias = jax.random.uniform(k_tb, (1,), dtype=jnp.float32)
    periodic_weight = jax.random.uniform(k_pw, (t_dim, num_frequency), dtype=jnp.float32)
    periodic_bias = jax.random.uniform(k_pb, (S, num_frequency), dtype=jnp.float32)

    out = time2vec_pallas(inputs, trend_weight, trend_bias,
                          periodic_weight, periodic_bias,
                          num_vars=num_vars, num_frequency=num_frequency)
    out = jax.block_until_ready(out)

    ref = time2vec_reference(inputs, trend_weight, trend_bias,
                             periodic_weight, periodic_bias, num_vars=num_vars)

    assert out.shape == (B, S, D + num_frequency), out.shape
    assert jnp.allclose(out, ref, atol=1e-5, rtol=1e-5), "mismatch vs reference"

    print("KERNEL_OK")
</pallas_src>

<mosaic_0001>
module attributes {stable_mosaic.version = 11 : i64} {
  func.func @_time2vec_kernel(%arg0: i32, %arg1: memref<1xf32, #tpu.memory_space<smem>>, %arg2: memref<1xf32, #tpu.memory_space<smem>>, %arg3: memref<16x16xf32, #tpu.memory_space<vmem>>, %arg4: memref<16x32xf32, #tpu.memory_space<vmem>>, %arg5: memref<16x32xf32, #tpu.memory_space<vmem>>, %arg6: memref<16x48xf32, #tpu.memory_space<vmem>>) attributes {dimension_semantics = [#tpu.dimension_semantics<parallel>], iteration_bounds = array<i64: 1>, scalar_prefetch = 0 : i64, scratch_operands = 0 : i64, tpu.core_type = #tpu.core_type<tc>, window_params = [{transform_indices = @transform_0, window_bounds = array<i64: 1>}, {transform_indices = @transform_1, window_bounds = array<i64: 1>}, {transform_indices = @transform_2, window_bounds = array<i64: 16, 16>}, {pipeline_mode = #tpu.pipeline_mode<synchronous>, transform_indices = @transform_3, window_bounds = array<i64: 16, 32>}, {pipeline_mode = #tpu.pipeline_mode<synchronous>, transform_indices = @transform_4, window_bounds = array<i64: 16, 32>}, {transform_indices = @transform_5, window_bounds = array<i64: 16, 48>}]} {
    %c0 = arith.constant 0 : index
    %c0_0 = arith.constant 0 : index
    %0 = vector.load %arg3[%c0, %c0_0] : memref<16x16xf32, #tpu.memory_space<vmem>>, vector<16x16xf32>
    %c0_1 = arith.constant 0 : index
    %1 = memref.load %arg1[%c0_1] : memref<1xf32, #tpu.memory_space<smem>>
    %c0_2 = arith.constant 0 : index
    %2 = memref.load %arg2[%c0_2] : memref<1xf32, #tpu.memory_space<smem>>
    %3 = tpu.iota {dimensions = array<i32: 1>} : vector<16x16xi32>
    %c3_i32 = arith.constant 3 : i32
    %4 = vector.broadcast %c3_i32 : i32 to vector<16x16xi32>
    %5 = arith.cmpi sge, %3, %4 : vector<16x16xi32>
    %6 = vector.broadcast %1 : f32 to vector<16x16xf32>
    %7 = arith.mulf %6, %0 : vector<16x16xf32>
    %8 = vector.broadcast %2 : f32 to vector<16x16xf32>
    %9 = arith.addf %7, %8 : vector<16x16xf32>
    %10 = arith.select %5, %9, %0 : vector<16x16xi1>, vector<16x16xf32>
    %c0_3 = arith.constant 0 : index
    %c0_4 = arith.constant 0 : index
    %11 = vector.load %arg4[%c0_3, %c0_4] : memref<16x32xf32, #tpu.memory_space<vmem>>, vector<16x32xf32>
    %cst = arith.constant dense<0.000000e+00> : vector<16x32xf32>
    %12 = tpu.matmul %0, %11, %cst {dimension_numbers = #tpu.dot_dimension_numbers<[1], [0], [0], [1], [0, 0, 1, 1], [], []>} : vector<16x16xf32>, vector<16x32xf32>, vector<16x32xf32> -> vector<16x32xf32>
    %c0_5 = arith.constant 0 : index
    %c0_6 = arith.constant 0 : index
    %13 = vector.load %arg5[%c0_5, %c0_6] : memref<16x32xf32, #tpu.memory_space<vmem>>, vector<16x32xf32>
    %14 = arith.addf %12, %13 : vector<16x32xf32>
    %15 = math.sin %14 : vector<16x32xf32>
    %16 = tpu.concatenate %10, %15 in 1 : vector<16x16xf32>, vector<16x32xf32> -> vector<16x48xf32>
    %c0_7 = arith.constant 0 : index
    %c0_8 = arith.constant 0 : index
    %17 = vector.load %arg6[%c0_7, %c0_8] : memref<16x48xf32, #tpu.memory_space<vmem>>, vector<16x48xf32>
    tpu.vector_store %arg6[%c0_7, %c0_8], %16 {strides = array<i32>} : memref<16x48xf32, #tpu.memory_space<vmem>>, vector<16x48xf32>,
    return
  }
  func.func @transform_0(%arg0: i32) -> i32 {
    %c0_i32 = arith.constant 0 : i32
    %c0_i32_0 = arith.constant 0 : i32
    return %c0_i32 : i32
  }
  func.func @transform_1(%arg0: i32) -> i32 {
    %c0_i32 = arith.constant 0 : i32
    %c0_i32_0 = arith.constant 0 : i32
    return %c0_i32 : i32
  }
  func.func @transform_2(%arg0: i32) -> (i32, i32) {
    %c0_i32 = arith.constant 0 : i32
    %c0_i32_0 = arith.constant 0 : i32
    return %arg0, %c0_i32 : i32, i32
  }
  func.func @transform_3(%arg0: i32) -> (i32, i32) {
    %c0_i32 = arith.constant 0 : i32
    %c0_i32_0 = arith.constant 0 : i32
    %c0_i32_1 = arith.constant 0 : i32
    return %c0_i32, %c0_i32_0 : i32, i32
  }
  func.func @transform_4(%arg0: i32) -> (i32, i32) {
    %c0_i32 = arith.constant 0 : i32
    %c0_i32_0 = arith.constant 0 : i32
    %c0_i32_1 = arith.constant 0 : i32
    return %c0_i32, %c0_i32_0 : i32, i32
  }
  func.func @transform_5(%arg0: i32) -> (i32, i32) {
    %c0_i32 = arith.constant 0 : i32
    %c0_i32_0 = arith.constant 0 : i32
    return %arg0, %c0_i32 : i32, i32
  }
}

</mosaic_0001>

<llo_original>
// kernel: tpu_custom_call.1
$region0: #{tpu_custom_call.1}
  #allocation0 [shape = 'u32[]', space=smem, size = 0x4, offset = 0x4, fixed_abs, tag = 'smem constant byte address 0x4 - core index']
  #allocation1 [shape = 'u32[144,128]{1,0:T(1,128)}', space=vmem, size = 0x12000, scoped, tag = 'internal scratch']
  #allocation2 [shape = 'f32[1]{0:T(128)S(6)}', space=smem, size = 0x200, scoped, tag = 'scoped memory for tpu_custom_call.1']
  #allocation3 [shape = 'f32[1]{0:T(128)S(6)}', space=smem, size = 0x200, scoped, tag = 'scoped memory for tpu_custom_call.1']
  %s0 = inlined_call_operand.<no memory space> [shape: f32[1], index: 0, kind: input, shape index: {}]
  %s1 = inlined_call_operand.<no memory space> [shape: f32[1], index: 1, kind: input, shape index: {}]
  %s2 = inlined_call_operand.hbm [shape: f32[16,16], index: 2, kind: input, shape index: {}]
  %s3 = inlined_call_operand.hbm [shape: f32[16,32], index: 3, kind: input, shape index: {}]
  %s4 = inlined_call_operand.hbm [shape: f32[16,32], index: 4, kind: input, shape index: {}]
  %s5 = inlined_call_operand.hbm [shape: f32[16,48], index: 5, kind: output, shape index: {}]
  %s6 = sld [smem:[#allocation0]]
  $region42: #{tpu_custom_call.1} parent=0
    _
  %s8 = ssub.s32 1, %s6
  %s9 = scalar_select 0, %s8, %s6
  %10 = sst [smem:[#allocation2]] %s0
  %11 = sst [smem:[#allocation3]] %s1
  $region1: #{tpu_custom_call.1} parent=0
    #allocation4 [shape = 'u8[8192]{0}', space=vmem, size = 0x2000, scoped, tag = 'input window, operand 2, single buffered']
    #allocation5 [shape = 's32[1]{0}', space=sflag, size = 0x4, scoped, tag = 'scoped memory for tpu_custom_call.1']
    #allocation6 [shape = 's32[1]{0}', space=sflag, size = 0x4, scoped, tag = 'scoped memory for tpu_custom_call.1']
    #allocation7 [shape = 'u8[8192]{0}', space=vmem, size = 0x2000, scoped, tag = 'input window, operand 3, single buffered']
    #allocation8 [shape = 's32[1]{0}', space=sflag, size = 0x4, scoped, tag = 'scoped memory for tpu_custom_call.1']
    #allocation9 [shape = 'u8[8192]{0}', space=vmem, size = 0x2000, scoped, tag = 'input window, operand 4, single buffered']
    #allocation10 [shape = 'u8[8192]{0}', space=vmem, size = 0x2000, scoped, tag = 'output window, operand 0, single buffered']
    %12 = vsyncpa [#allocation5], 0
    %13 = vsyncpa [#allocation8], 0
    %14 = vsyncpa [#allocation6], 0
    // Predicated region
    $region2: #{tpu_custom_call.1} parent=1 // pred_check
      _
    $region3: #{tpu_custom_call.1} parent=1 // pred_check_branch
      %16 = sbr.rel (0) target = $region5
    $region4: #{tpu_custom_call.1} parent=1 // pred_region
      _
    $region5: #{tpu_custom_call.1} parent=1 // pred_fallthru
      _
    // Predicated region
    $region6: #{tpu_custom_call.1} parent=1 // pred_check
      _
    $region7: #{tpu_custom_call.1} parent=1 // pred_check_branch
      %18 = sbr.rel (0) target = $region9
    $region8: #{tpu_custom_call.1} parent=1 // pred_region
      _
    $region9: #{tpu_custom_call.1} parent=1 // pred_fallthru
      _
    // Predicated region
    $region10: #{tpu_custom_call.1} parent=1 // pred_check
      _
    $region11: #{tpu_custom_call.1} parent=1 // pred_check_branch
      %20 = sbr.rel (0) target = $region13
    $region12: #{tpu_custom_call.1} parent=1 // pred_region
      %s22 = ssub.s32 256, 256
      %23 = vsyncadd [#allocation5], %s22
      %s24 = sshll.u32 [#allocation4], 4
      %s25 = int_to_ptr.vmem [resolvable:$true] %s24
      %30 = dma.hbm_to_vmem [thread:$0]  %s2, 256, %s25, [#allocation5], 128, 128, 8
    $region13: #{tpu_custom_call.1} parent=1 // pred_fallthru
      _
    // Predicated region
    $region14: #{tpu_custom_call.1} parent=1 // pred_check
      _
    $region15: #{tpu_custom_call.1} parent=1 // pred_check_branch
      %32 = sbr.rel (0) target = $region17
    $region16: #{tpu_custom_call.1} parent=1 // pred_region
      %s34 = ssub.s32 256, 256
      %35 = vsyncadd [#allocation8], %s34
      %s36 = sshll.u32 [#allocation7], 4
      %s37 = int_to_ptr.vmem [resolvable:$true] %s36
      %42 = dma.hbm_to_vmem [thread:$0]  %s3, 256, %s37, [#allocation8], 128, 128, 8
    $region17: #{tpu_custom_call.1} parent=1 // pred_fallthru
      _
    // Predicated region
    $region18: #{tpu_custom_call.1} parent=1 // pred_check
      _
    $region19: #{tpu_custom_call.1} parent=1 // pred_check_branch
      %44 = sbr.rel (0) target = $region21
    $region20: #{tpu_custom_call.1} parent=1 // pred_region
      %s46 = ssub.s32 256, 256
      %47 = vsyncadd [#allocation8], %s46
      %s48 = sshll.u32 [#allocation9], 4
      %s49 = int_to_ptr.vmem [resolvable:$true] %s48
      %54 = dma.hbm_to_vmem [thread:$0]  %s4, 256, %s49, [#allocation8], 128, 128, 8
    $region21: #{tpu_custom_call.1} parent=1 // pred_fallthru
      _
    // Predicated region
    $region22: #{tpu_custom_call.1} parent=1 // pred_check
      _
    $region23: #{tpu_custom_call.1} parent=1 // pred_check_branch
      %56 = sbr.rel (0) target = $region25
    $region24: #{tpu_custom_call.1} parent=1 // pred_region
      %57 = dma.done [#allocation5], 256
    $region25: #{tpu_custom_call.1} parent=1 // pred_fallthru
      _
    // Predicated region
    $region26: #{tpu_custom_call.1} parent=1 // pred_check
      _
    $region27: #{tpu_custom_call.1} parent=1 // pred_check_branch
      %59 = sbr.rel (0) target = $region29
    $region28: #{tpu_custom_call.1} parent=1 // pred_region
      %60 = dma.done [#allocation8], 256
    $region29: #{tpu_custom_call.1} parent=1 // pred_fallthru
      _
    // Predicated region
    $region30: #{tpu_custom_call.1} parent=1 // pred_check
      _
    $region31: #{tpu_custom_call.1} parent=1 // pred_check_branch
      %62 = sbr.rel (0) target = $region33
    $region32: #{tpu_custom_call.1} parent=1 // pred_region
      %63 = dma.done [#allocation8], 256
    $region33: #{tpu_custom_call.1} parent=1 // pred_fallthru
      _
    %v64 = vld [vmem:[#allocation4] sm:$0xff]
    %v65 = vld [vmem:[#allocation4 + $0x8] sm:$0xff]
    %s66 = sld [smem:[#allocation2]]
    %s67 = sld [smem:[#allocation3]]
    %v68 = vlaneseq
    %v69 = vand.u32 %v68, 127
    %vm70 = vcmp.ge.s32.totalorder %v69, 3
    %v71 = vstv %s66
    %v72 = vmul.f32 %v71, %v64
    %v73 = vmul.f32 %v71, %v65
    %v74 = vstv %s67
    %v75 = vadd.f32 %v72, %v74
    %v76 = vadd.f32 %v73, %v74
    %v77 = vsel %vm70, %v75, %v64
    %v78 = vsel %vm70, %v76, %v65
    %v79 = vld [vmem:[#allocation7] sm:$0xff]
    %v80 = vld [vmem:[#allocation7 + $0x8] sm:$0xff]
    %v81 = vld [vmem:[#allocation9] sm:$0xff]
    %v82 = vld [vmem:[#allocation9 + $0x8] sm:$0xff]
    %vm83 = vcmask 130048
    %v85 = vsel %vm83, %v64, 0
    %v88 = vsel %vm83, %v65, 0
    %90 = vmatprep.subr.mxu0 0.0
    %91 = vmatpush1.msra.mxu0 %v79
    %92 = vmatprep.subr.mxu0 0.0
    %93 = vmatpush1.msra.mxu0 %v80
    %94 = vmatprep.subr.mxu0 0.0
    %95 = vmatpush1.msra.mxu0 0.0
    %96 = vmatprep.subr.mxu0 0.0
    %97 = vmatpush1.msra.mxu0 0.0
    %98 = vmatprep.subr.mxu0 0.0
    %99 = vmatpush1.msra.mxu0 0.0
    %100 = vmatprep.subr.mxu0 0.0
    %101 = vmatpush1.msra.mxu0 0.0
    %102 = vmatprep.subr.mxu0 0.0
    %103 = vmatpush1.msra.mxu0 0.0
    %104 = vmatprep.subr.mxu0 0.0
    %105 = vmatpush1.msra.mxu0 0.0
    %106 = vmatprep.subr.mxu0 0.0
    %107 = vmatpush1.msra.mxu0 0.0
    %108 = vmatprep.subr.mxu0 0.0
    %109 = vmatpush1.msra.mxu0 0.0
    %110 = vmatprep.subr.mxu0 0.0
    %111 = vmatpush1.msra.mxu0 0.0
    %112 = vmatprep.subr.mxu0 0.0
    %113 = vmatpush1.msra.mxu0 0.0
    %114 = vmatprep.subr.mxu0 0.0
    %115 = vmatpush1.msra.mxu0 0.0
    %116 = vmatprep.subr.mxu0 0.0
    %117 = vmatpush1.msra.mxu0 0.0
    %118 = vmatprep.subr.mxu0 0.0
    %119 = vmatpush1.msra.mxu0 0.0
    %120 = vmatprep.subr.mxu0 0.0
    %121 = vmatpush1.msra.mxu0 0.0
    %122 = vmatprep.subr.mxu0 0.0
    %123 = vmatpush1.msra.mxu0 0.0
    %124 = vmatprep.subr.mxu0 0.0
    %125 = vmatpush1.msra.mxu0 0.0
    %126 = vmatprep.subr.mxu0 0.0
    %127 = vmatpush1.msra.mxu0 0.0
    %128 = vmatprep.subr.mxu0 0.0
    %129 = vmatpush1.msra.mxu0 0.0
    %130 = vmatprep.subr.mxu0 0.0
    %131 = vmatpush1.msra.mxu0 0.0
    %132 = vmatprep.subr.mxu0 0.0
    %133 = vmatpush1.msra.mxu0 0.0
    %134 = vmatprep.subr.mxu0 0.0
    %135 = vmatpush1.msra.mxu0 0.0
    %136 = vmatprep.subr.mxu0 0.0
    %137 = vmatpush1.msra.mxu0 0.0
    %138 = vmatprep.subr.mxu0 0.0
    %139 = vmatpush1.msra.mxu0 0.0
    %140 = vmatprep.subr.mxu0 0.0
    %141 = vmatpush1.msra.mxu0 0.0
    %142 = vmatprep.subr.mxu0 0.0
    %143 = vmatpush1.msra.mxu0 0.0
    %144 = vmatprep.subr.mxu0 0.0
    %145 = vmatpush1.msra.mxu0 0.0
    %146 = vmatprep.subr.mxu0 0.0
    %147 = vmatpush1.msra.mxu0 0.0
    %148 = vmatprep.subr.mxu0 0.0
    %149 = vmatpush1.msra.mxu0 0.0
    %150 = vmatprep.subr.mxu0 0.0
    %151 = vmatpush1.msra.mxu0 0.0
    %152 = vmatprep.subr.mxu0 0.0
    %153 = vmatpush1.msra.mxu0 0.0
    %154 = vmatprep.mubr.f32.mxu0 0.0
    %155 = vmatmul.mubr.f32.gmra.mrb[0].mxu0 %v85
    %v156 = vpop.f32.mrb[0].mxu0
    %v157 = vadd.f32 %v81, %v156
    %v158 = vpop.f32.mrb[0].mxu0
    %159 = vmatprep.mubr.f32.mxu0 0.0
    %160 = vmatmul.mubr.f32.gmra.mrb[0].mxu0 %v88
    %v161 = vpop.f32.mrb[0].mxu0
    %v162 = vadd.f32 %v82, %v161
    %v163 = vpop.f32.mrb[0].mxu0
    %164 = vdwg.mxu0
    %v165 = vand.u32 2147483647, %v157
    %vm166 = vcmp.le.f32.partialorder %v165, 0.7853982
    %vm167 = vcmp.lt.s32.totalorder %v157, 0
    %v168 = vand.u32 %v157, 2139095040
    %v169 = vshrl.u32 %v168, 23
    %v170 = vsub.s32 %v169, 127
    %v171 = vand.u32 2147483647, %v157
    %v172 = vand.u32 %v171, 8388607
    %v173 = vor.u32 %v172, 8388608
    %v174 = vsub.s32 0, %v173
    %v175 = vadd.s32 %v170, 1
    %vm176 = vcmp.gt.s32.totalorder %v175, 0
    %v177 = vsel %vm176, %v175, 0
    %v178 = vshrl.u32 %v177, 5
    %v179 = vand.u32 %v177, 31
    %v180 = vsub.s32 32, %v179
    %v181 = vshrl.u32 683565275, %v180
    %v182 = vshll.u32 683565275, %v179
    %v183 = vshrl.u32 2475754826, %v180
    %v184 = vor.u32 %v182, %v183
    %v185 = vshll.u32 2475754826, %v179
    %v186 = vshrl.u32 2131351028, %v180
    %v187 = vor.u32 %v185, %v186
    %v188 = vshll.u32 2131351028, %v179
    %v189 = vshrl.u32 2102212464, %v180
    %v190 = vor.u32 %v188, %v189
    %v191 = vshll.u32 2102212464, %v179
    %v192 = vshrl.u32 920167782, %v180
    %v193 = vor.u32 %v191, %v192
    %v194 = vshll.u32 920167782, %v179
    %v195 = vshrl.u32 1326507024, %v180
    %v196 = vor.u32 %v194, %v195
    %vm197 = vcmp.lt.s32.totalorder %v178, 1
    %vm198 = vcmp.lt.s32.totalorder %v178, 2
    %vm199 = vcmp.lt.s32.totalorder %v178, 3
    %vm200 = vcmp.lt.s32.totalorder %v178, 4
    %v201 = vsel %vm197, %v181, %v184
    %v202 = vsel %vm200, %v190, 2102212464
    %v203 = vsel %vm199, %v187, %v202
    %v204 = vsel %vm198, %v201, %v203
    %v205 = vsel %vm197, %v184, %v187
    %v206 = vsel %vm200, %v193, 920167782
    %v207 = vsel %vm199, %v190, %v206
    %v208 = vsel %vm198, %v205, %v207
    %v209 = vsel %vm197, %v187, %v190
    %v210 = vsel %vm200, %v196, 1326507024
    %v211 = vsel %vm199, %v193, %v210
    %v212 = vsel %vm198, %v209, %v211
    %v213 = vshll.u32 %v173, 8
    %v214 = vmul.u32.u64.compose %v213, %v212
    %v215 = vextract.low.u32 %v214
    %v216 = vextract.high.u32 %v214
    %v217 = vmul.u32.u64.compose %v213, %v208
    %v218 = vextract.low.u32 %v217
    %v219 = vextract.high.u32 %v217
    %v220 = vmul.u32 %v213, %v204
    %v221 = vadd.s32 %v216, %v218
    %vm222 = vc.u32 %v216, %v218
    %v223 = vadd.s32 %v219, 1
    %v224 = vsel %vm222, %v223, %v219
    %v225 = vadd.s32 %v220, %v224
    %v226 = vadd.s32 %v225, 536870912
    %v227 = vshrl.u32 %v226, 30
    %v228 = vshll.u32 %v227, 30
    %v229 = vsub.s32 %v225, %v228
    %vm230 = vcmp.lt.s32.totalorder %v229, 0
    %v231 = vsub.s32 0, %v229
    %v232 = vsel %vm230, %v231, %v229
    %v233 = vclz %v232
    %v234 = vsub.s32 %v233, 2
    %vm235 = vcmp.gt.s32.totalorder 0, %v234
    %v236 = vsel %vm235, 0, %v234
    %v237 = vsub.s32 32, %v236
    %v238 = vshll.u32 %v229, %v236
    %v239 = vshrl.u32 %v221, %v237
    %v240 = vor.u32 %v238, %v239
    %v241 = vsub.s32 4294967266, %v236
    %v242 = vadd.s32 %v241, 127
    %v243 = vshll.u32 %v242, 23
    %v244 = vor.u32 4788187, %v243
    %v245 = vand.u32 2147483647, %v244
    %v247 = vcvt.s32.f32 %v240
    %v248 = vmul.f32 %v247, %v245
    %v249 = vxor.u32 %v248, 2147483648
    %v250 = vsel %vm167, %v249, %v248
    %v251 = vsub.s32 4, %v227
    %v252 = vsel %vm167, %v251, %v227
    %v253 = vsel %vm166, %v157, %v250
    %v254 = vsel %vm166, 0, %v252
    %v255 = vcosq.f32.pop %v253
    %v256 = vsinq.f32.pop %v253
    %vm257 = vweird.f32 %v157
    %v258 = vadd.s32 %v254, 3
    %v259 = vand.u32 %v258, 3
    %vm260 = vcmp.lt.s32.totalorder %v259, 2
    %vm261 = vcmp.eq.s32.totalorder %v259, 0
    %v262 = vxor.u32 %v256, 2147483648
    %v263 = vsel %vm261, %v255, %v262
    %vm264 = vcmp.eq.s32.totalorder %v259, 2
    %v265 = vxor.u32 %v255, 2147483648
    %v266 = vsel %vm264, %v265, %v256
    %v267 = vsel %vm260, %v263, %v266
    %v268 = vsel %vm257, nan, %v267
    %v269 = vand.u32 2147483647, %v162
    %vm270 = vcmp.le.f32.partialorder %v269, 0.7853982
    %vm271 = vcmp.lt.s32.totalorder %v162, 0
    %v272 = vand.u32 %v162, 2139095040
    %v273 = vshrl.u32 %v272, 23
    %v274 = vsub.s32 %v273, 127
    %v275 = vand.u32 2147483647, %v162
    %v276 = vand.u32 %v275, 8388607
    %v277 = vor.u32 %v276, 8388608
    %v278 = vsub.s32 0, %v277
    %v279 = vadd.s32 %v274, 1
    %vm280 = vcmp.gt.s32.totalorder %v279, 0
    %v281 = vsel %vm280, %v279, 0
    %v282 = vshrl.u32 %v281, 5
    %v283 = vand.u32 %v281, 31
    %v284 = vsub.s32 32, %v283
    %v285 = vshrl.u32 683565275, %v284
    %v286 = vshll.u32 683565275, %v283
    %v287 = vshrl.u32 2475754826, %v284
    %v288 = vor.u32 %v286, %v287
    %v289 = vshll.u32 2475754826, %v283
    %v290 = vshrl.u32 2131351028, %v284
    %v291 = vor.u32 %v289, %v290
    %v292 = vshll.u32 2131351028, %v283
    %v293 = vshrl.u32 2102212464, %v284
    %v294 = vor.u32 %v292, %v293
    %v295 = vshll.u32 2102212464, %v283
    %v296 = vshrl.u32 920167782, %v284
    %v297 = vor.u32 %v295, %v296
    %v298 = vshll.u32 920167782, %v283
    %v299 = vshrl.u32 1326507024, %v284
    %v300 = vor.u32 %v298, %v299
    %vm301 = vcmp.lt.s32.totalorder %v282, 1
    %vm302 = vcmp.lt.s32.totalorder %v282, 2
    %vm303 = vcmp.lt.s32.totalorder %v282, 3
    %vm304 = vcmp.lt.s32.totalorder %v282, 4
    %v305 = vsel %vm301, %v285, %v288
    %v306 = vsel %vm304, %v294, 2102212464
    %v307 = vsel %vm303, %v291, %v306
    %v308 = vsel %vm302, %v305, %v307
    %v309 = vsel %vm301, %v288, %v291
    %v310 = vsel %vm304, %v297, 920167782
    %v311 = vsel %vm303, %v294, %v310
    %v312 = vsel %vm302, %v309, %v311
    %v313 = vsel %vm301, %v291, %v294
    %v314 = vsel %vm304, %v300, 1326507024
    %v315 = vsel %vm303, %v297, %v314
    %v316 = vsel %vm302, %v313, %v315
    %v317 = vshll.u32 %v277, 8
    %v318 = vmul.u32.u64.compose %v317, %v316
    %v319 = vextract.low.u32 %v318
    %v320 = vextract.high.u32 %v318
    %v321 = vmul.u32.u64.compose %v317, %v312
    %v322 = vextract.low.u32 %v321
    %v323 = vextract.high.u32 %v321
    %v324 = vmul.u32 %v317, %v308
    %v325 = vadd.s32 %v320, %v322
    %vm326 = vc.u32 %v320, %v322
    %v327 = vadd.s32 %v323, 1
    %v328 = vsel %vm326, %v327, %v323
    %v329 = vadd.s32 %v324, %v328
    %v330 = vadd.s32 %v329, 536870912
    %v331 = vshrl.u32 %v330, 30
    %v332 = vshll.u32 %v331, 30
    %v333 = vsub.s32 %v329, %v332
    %vm334 = vcmp.lt.s32.totalorder %v333, 0
    %v335 = vsub.s32 0, %v333
    %v336 = vsel %vm334, %v335, %v333
    %v337 = vclz %v336
    %v338 = vsub.s32 %v337, 2
    %vm339 = vcmp.gt.s32.totalorder 0, %v338
    %v340 = vsel %vm339, 0, %v338
    %v341 = vsub.s32 32, %v340
    %v342 = vshll.u32 %v333, %v340
    %v343 = vshrl.u32 %v325, %v341
    %v344 = vor.u32 %v342, %v343
    %v345 = vsub.s32 4294967266, %v340
    %v346 = vadd.s32 %v345, 127
    %v347 = vshll.u32 %v346, 23
    %v348 = vor.u32 4788187, %v347
    %v349 = vand.u32 2147483647, %v348
    %v351 = vcvt.s32.f32 %v344
    %v352 = vmul.f32 %v351, %v349
    %v353 = vxor.u32 %v352, 2147483648
    %v354 = vsel %vm271, %v353, %v352
    %v355 = vsub.s32 4, %v331
    %v356 = vsel %vm271, %v355, %v331
    %v357 = vsel %vm270, %v162, %v354
    %v358 = vsel %vm270, 0, %v356
    %v359 = vcosq.f32.pop %v357
    %v360 = vsinq.f32.pop %v357
    %vm361 = vweird.f32 %v162
    %v362 = vadd.s32 %v358, 3
    %v363 = vand.u32 %v362, 3
    %vm364 = vcmp.lt.s32.totalorder %v363, 2
    %vm365 = vcmp.eq.s32.totalorder %v363, 0
    %v366 = vxor.u32 %v360, 2147483648
    %v367 = vsel %vm365, %v359, %v366
    %vm368 = vcmp.eq.s32.totalorder %v363, 2
    %v369 = vxor.u32 %v359, 2147483648
    %v370 = vsel %vm368, %v369, %v360
    %v371 = vsel %vm364, %v367, %v370
    %v372 = vsel %vm361, nan, %v371
    %375 = vrot.lane.b32.xlu0 %v268, 16
    %v376 = vpop.permute.xlu0 %375
    %377 = vrot.lane.b32.xlu0 %v372, 16
    %v378 = vpop.permute.xlu0 %377
    %v381 = vsel %vm83, %v77, %v376
    %v382 = vsel %vm83, %v78, %v378
    %vm383 = vcmask 392192
    %384 = vst.msk [vmem:[#allocation10] sm:$0xff] %vm383, %v381
    %385 = vst.msk [vmem:[#allocation10 + $0x8] sm:$0xff] %vm383, %v382
    // Predicated region
    $region34: #{tpu_custom_call.1} parent=1 // pred_check
      _
    $region35: #{tpu_custom_call.1} parent=1 // pred_check_branch
      %387 = sbr.rel (0) target = $region37
    $region36: #{tpu_custom_call.1} parent=1 // pred_region
      %s389 = ssub.s32 256, 256
      %390 = vsyncadd [#allocation6], %s389
      %s391 = sshll.u32 [#allocation10], 4
      %s392 = int_to_ptr.vmem [resolvable:$true] %s391
      %397 = dma.vmem_to_hbm [thread:$0]  %s392, 256, %s5, [#allocation6], 128, 128, 8
    $region37: #{tpu_custom_call.1} parent=1 // pred_fallthru
      _
    // Predicated region
    $region38: #{tpu_custom_call.1} parent=1 // pred_check
      _
    $region39: #{tpu_custom_call.1} parent=1 // pred_check_branch
      %399 = sbr.rel (0) target = $region41
    $region40: #{tpu_custom_call.1} parent=1 // pred_region
      %400 = dma.done [#allocation6], 256
    $region41: #{tpu_custom_call.1} parent=1 // pred_fallthru
      _
    %401 = vsyncpa [#allocation5], 1
    %402 = vsyncpa [#allocation8], 1
    %403 = vsyncpa [#allocation6], 1

</llo_original>
